<compile_context>
chip_gen: v5e
topology: v5e:2x2
jax: 0.10.0
libtpu: 0.0.40
codegen_flags: <defaults>
</compile_context>

<pallas_src>
import functools

import jax
import jax.numpy as jnp
from jax.experimental import pallas as pl
from jax.experimental.pallas import tpu as pltpu


def _round_up(x: int, m: int) -> int:
    return ((x + m - 1) // m) * m


# ----------------------------------------------------------------------------
# Pallas kernels: the "delegated program" hot path  (relu(x @ W + b))
# ----------------------------------------------------------------------------
def _linear_relu_kernel_acc(x_ref, w_ref, b_ref, o_ref, acc_ref):
    """3-D grid (i, j, k): K-reduction with resident f32 VMEM accumulator."""
    k = pl.program_id(2)

    @pl.when(k == 0)
    def _init():
        acc_ref[...] = jnp.zeros_like(acc_ref)

    acc_ref[...] += jnp.dot(
        x_ref[...], w_ref[...], preferred_element_type=jnp.float32
    )

    @pl.when(k == pl.num_programs(2) - 1)
    def _finalize():
        acc = acc_ref[...] + b_ref[...].astype(jnp.float32)
        o_ref[...] = jnp.maximum(acc, 0.0).astype(o_ref.dtype)


def _linear_relu_kernel_fused(x_ref, w_ref, b_ref, o_ref):
    """2-D grid (i, j): K collapsed into one block -> no accumulator revisit."""
    acc = jnp.dot(x_ref[...], w_ref[...], preferred_element_type=jnp.float32)
    acc = acc + b_ref[...].astype(jnp.float32)
    o_ref[...] = jnp.maximum(acc, 0.0).astype(o_ref.dtype)


# ----------------------------------------------------------------------------
# Tiling / VMEM heuristics
# ----------------------------------------------------------------------------
def _pick_tile_m(M: int) -> int:
    """Largest tm whose pad-to-tile waste stays under ~12.5% of M."""
    for cand in (512, 256, 128, 64, 32, 16, 8):
        if (_round_up(M, cand) - M) * 8 <= max(M, 8):
            return cand
    return 8


def _vmem_limit_bytes(tm, tn, tk, in_itemsize, out_itemsize) -> int:
    # double-buffered x / W / bias input tiles + double-buffered output tile
    # + f32 accumulator, with ~25% headroom for compiler-internal scratch.
    buf = 2 * (tm * tk + tk * tn + tn) * in_itemsize
    buf += 2 * tm * tn * out_itemsize
    buf += tm * tn * 4
    limit = int(buf * 1.25) + (1 << 20)
    # Keep at least the common scoped default, cap well inside v7x's 64 MiB.
    return min(max(limit, 32 * 1024 * 1024), 48 * 1024 * 1024)


# ----------------------------------------------------------------------------
# Jitted Pallas delegate body (padding + kernel + slice all fuse under jit)
# ----------------------------------------------------------------------------
@functools.partial(
    jax.jit, static_argnames=("tm", "tn", "tk", "out_n", "out_dtype")
)
def _pallas_linear_relu(x, w_p, b_p, *, tm, tn, tk, out_n, out_dtype):
    M, K = x.shape
    Kp, Np = w_p.shape
    Mp = _round_up(M, tm)

    # Pad x inside jit (fuses); zero-padded K rows contribute 0 to the matmul.
    if Mp != M or Kp != K:
        x = jnp.pad(x, ((0, Mp - M), (0, Kp - K)))

    grid_i, grid_j, grid_k = Mp // tm, Np // tn, Kp // tk

    in_itemsize = jnp.dtype(x.dtype).itemsize
    out_itemsize = jnp.dtype(out_dtype).itemsize
    vmem_limit = _vmem_limit_bytes(tm, tn, tk, in_itemsize, out_itemsize)

    # Advisory cost estimate, accounting for operand re-streaming across i/j.
    cost = pl.CostEstimate(
        flops=2 * Mp * Np * Kp,
        transcendentals=0,
        bytes_accessed=(
            in_itemsize * (Mp * Kp * grid_j + Kp * Np * grid_i + Np)
            + out_itemsize * Mp * Np
        ),
    )

    if grid_k == 1:
        # K fits in a single block: 2-D grid, whole W column-panel resident.
        out = pl.pallas_call(
            _linear_relu_kernel_fused,
            out_shape=jax.ShapeDtypeStruct((Mp, Np), out_dtype),
            grid_spec=pltpu.PrefetchScalarGridSpec(
                num_scalar_prefetch=0,
                grid=(grid_i, grid_j),
                in_specs=[
                    pl.BlockSpec((tm, tk), lambda i, j: (i, 0)),   # x tile
                    pl.BlockSpec((tk, tn), lambda i, j: (0, j)),   # W tile
                    pl.BlockSpec((1, tn), lambda i, j: (0, j)),    # bias tile
                ],
                out_specs=pl.BlockSpec((tm, tn), lambda i, j: (i, j)),
            ),
            compiler_params=pltpu.CompilerParams(
                dimension_semantics=("parallel", "parallel"),
                vmem_limit_bytes=vmem_limit,
            ),
            cost_estimate=cost,
        )(x, w_p, b_p)
    else:
        # Large K: 3-D grid with resident f32 accumulator along the k axis.
        out = pl.pallas_call(
            _linear_relu_kernel_acc,
            out_shape=jax.ShapeDtypeStruct((Mp, Np), out_dtype),
            grid_spec=pltpu.PrefetchScalarGridSpec(
                num_scalar_prefetch=0,
                grid=(grid_i, grid_j, grid_k),
                in_specs=[
                    pl.BlockSpec((tm, tk), lambda i, j, k: (i, k)),  # x tile
                    pl.BlockSpec((tk, tn), lambda i, j, k: (k, j)),  # W tile
                    pl.BlockSpec((1, tn), lambda i, j, k: (0, j)),   # bias tile
                ],
                out_specs=pl.BlockSpec((tm, tn), lambda i, j, k: (i, j)),
                scratch_shapes=[pltpu.VMEM((tm, tn), jnp.float32)],
            ),
            compiler_params=pltpu.CompilerParams(
                dimension_semantics=("parallel", "parallel", "arbitrary"),
                vmem_limit_bytes=vmem_limit,
            ),
            cost_estimate=cost,
        )(x, w_p, b_p)

    return out[:M, :out_n]


# ----------------------------------------------------------------------------
# Delegate dispatch (executorch_call_delegate equivalent)
# ----------------------------------------------------------------------------
_XLA_FAST_PATH_THRESHOLD = 1 << 21  # M*N*K below this -> plain XLA fast path


def executorch_call_delegate(lowered_module, x, *, force_pallas=False):
    """Pallas implementation of the delegate dispatch for the synthetic payload."""
    M, K = x.shape
    assert K == lowered_module._in_features
    N = lowered_module._out_features

    if (not force_pallas) and (M * N * K < _XLA_FAST_PATH_THRESHOLD):
        # Tiny delegated subgraph: padding to 128-lane MXU tiles would do
        # many-x redundant work plus launch overhead -> let XLA handle it.
        return jnp.maximum(x @ lowered_module._weight + lowered_module._bias, 0.0)

    w_p = lowered_module._weight_padded
    b_p = lowered_module._bias_padded
    tn = lowered_module._tn
    tk = lowered_module._tk

    tm = _pick_tile_m(M)
    # Ensure the (i, j) "parallel" grid splits across v7x's two TensorCores
    # when the problem is large enough to benefit.
    if (_round_up(M, tm) // tm) * (w_p.shape[1] // tn) == 1 and tm >= 256:
        tm //= 2

    if lowered_module._use_bf16:
        x = x.astype(jnp.bfloat16)

    return _pallas_linear_relu(
        x, w_p, b_p, tm=tm, tn=tn, tk=tk,
        out_n=N, out_dtype=lowered_module._out_dtype,
    )


# ----------------------------------------------------------------------------
# LoweredBackendModule equivalent (metadata container + delegate dispatch)
# ----------------------------------------------------------------------------
class LoweredBackendModule:
    """JAX analogue of exir.LoweredBackendModule.

    Stores backend metadata and the parameters of the (synthetic) delegated
    program; forward() dispatches to the Pallas delegate kernel, mirroring
    `executorch_call_delegate(self, *args)`.
    """

    def __init__(self, backend_id, processed_bytes, compile_specs,
                 hidden, out_features, dtype=jnp.float32, use_bf16=False):
        self._backend_id = backend_id
        self._processed_bytes = processed_bytes
        self._compile_specs = compile_specs
        self._in_features = hidden
        self._out_features = out_features
        self._out_dtype = dtype
        self._use_bf16 = use_bf16

        # Deterministic parameter init for the delegated linear+relu subgraph.
        kw, kb = jax.random.split(jax.random.PRNGKey(42))
        self._weight = (jax.random.normal(kw, (hidden, out_features), dtype)
                        * (1.0 / jnp.sqrt(hidden))).astype(dtype)
        self._bias = (jax.random.normal(kb, (1, out_features), dtype)
                      * 0.1).astype(dtype)

        # ---- static N/K tiling choice + one-time weight/bias padding --------
        # tn: lane-dense output, prefer full-width (256/512) v6e/v7x MXU tiles.
        np128 = _round_up(out_features, 128)
        if np128 >= 512:
            tn = 512
        elif np128 >= 256:
            tn = 256
        else:
            tn = np128
        Np = _round_up(out_features, tn)

        # tk: collapse the K reduction axis entirely when it fits one block.
        kp128 = _round_up(hidden, 128)
        if kp128 <= 2048:
            tk = kp128
            Kp = kp128
        else:
            tk = 1024
            Kp = _round_up(hidden, tk)

        self._tn, self._tk = tn, tk
        compute_dtype = jnp.bfloat16 if use_bf16 else dtype
        self._weight_padded = jnp.pad(
            self._weight, ((0, Kp - hidden), (0, Np - out_features))
        ).astype(compute_dtype)
        self._bias_padded = jnp.pad(
            self._bias, ((0, 0), (0, Np - out_features))
        ).astype(compute_dtype)

    # -- metadata properties, mirroring the original module ------------------
    @property
    def backend_id(self):
        return self._backend_id

    @property
    def processed_bytes(self):
        return self._processed_bytes

    @property
    def compile_specs(self):
        return self._compile_specs

    # -- forward --------------------------------------------------------------
    def forward(self, *args, **kwargs):
        return executorch_call_delegate(self, *args, **kwargs)

    __call__ = forward


# ----------------------------------------------------------------------------
if __name__ == "__main__":
    # Small shapes: batch=2, seq=8 -> M = 16 rows, hidden = 32, out = 32.
    batch, seq, hidden, out_features = 2, 8, 32, 32
    M = batch * seq

    key = jax.random.PRNGKey(0)
    x = jax.random.normal(key, (M, hidden), jnp.float32)

    module = LoweredBackendModule(
        backend_id="pallas_tpu_backend",
        processed_bytes=b"\x00synthetic_delegate_blob",
        compile_specs=[("tile", "adaptive")],
        hidden=hidden,
        out_features=out_features,
    )

    # Reference (plain JAX) for correctness.
    ref = jnp.maximum(x @ module._weight + module._bias, 0.0)

    # 1) Default dispatch: tiny subgraph takes the XLA fast path.
    y_fast = jax.block_until_ready(module(x))
    # 2) Explicit Pallas delegate kernel (the tiled MXU path).
    y_pallas = jax.block_until_ready(module(x, force_pallas=True))

    assert y_fast.shape == (M, out_features)
    assert y_pallas.shape == (M, out_features)
    assert jnp.allclose(y_fast, ref, atol=1e-5, rtol=1e-5)
    assert jnp.allclose(y_pallas, ref, atol=1e-5, rtol=1e-5)

    print("KERNEL_OK")
</pallas_src>

<mosaic_0001>
module attributes {stable_mosaic.version = 11 : i64} {
  func.func @_linear_relu_kernel_fused(%arg0: i32, %arg1: i32, %arg2: memref<16x128xf32, #tpu.memory_space<vmem>>, %arg3: memref<128x128xf32, #tpu.memory_space<vmem>>, %arg4: memref<1x128xf32, #tpu.memory_space<vmem>>, %arg5: memref<16x128xf32, #tpu.memory_space<vmem>>) attributes {dimension_semantics = [#tpu.dimension_semantics<parallel>, #tpu.dimension_semantics<parallel>], iteration_bounds = array<i64: 1, 1>, scalar_prefetch = 0 : i64, scratch_operands = 0 : i64, tpu.core_type = #tpu.core_type<tc>, window_params = [{transform_indices = @transform_0, window_bounds = array<i64: 16, 128>}, {transform_indices = @transform_1, window_bounds = array<i64: 128, 128>}, {transform_indices = @transform_2, window_bounds = array<i64: 1, 128>}, {transform_indices = @transform_3, window_bounds = array<i64: 16, 128>}]} {
    %c0 = arith.constant 0 : index
    %c0_0 = arith.constant 0 : index
    %0 = vector.load %arg2[%c0, %c0_0] : memref<16x128xf32, #tpu.memory_space<vmem>>, vector<16x128xf32>
    %c0_1 = arith.constant 0 : index
    %c0_2 = arith.constant 0 : index
    %1 = vector.load %arg3[%c0_1, %c0_2] : memref<128x128xf32, #tpu.memory_space<vmem>>, vector<128x128xf32>
    %cst = arith.constant dense<0.000000e+00> : vector<16x128xf32>
    %2 = tpu.matmul %0, %1, %cst {dimension_numbers = #tpu.dot_dimension_numbers<[1], [0], [0], [1], [0, 0, 1, 1], [], []>} : vector<16x128xf32>, vector<128x128xf32>, vector<16x128xf32> -> vector<16x128xf32>
    %c0_3 = arith.constant 0 : index
    %c0_4 = arith.constant 0 : index
    %3 = vector.load %arg4[%c0_3, %c0_4] : memref<1x128xf32, #tpu.memory_space<vmem>>, vector<1x128xf32>
    %4 = vector.broadcast %3 : vector<1x128xf32> to vector<16x128xf32>
    %5 = arith.addf %2, %4 : vector<16x128xf32>
    %cst_5 = arith.constant 0.000000e+00 : f32
    %6 = vector.broadcast %cst_5 : f32 to vector<16x128xf32>
    %7 = arith.maximumf %5, %6 : vector<16x128xf32>
    %c0_6 = arith.constant 0 : index
    %c0_7 = arith.constant 0 : index
    %8 = vector.load %arg5[%c0_6, %c0_7] : memref<16x128xf32, #tpu.memory_space<vmem>>, vector<16x128xf32>
    tpu.vector_store %arg5[%c0_6, %c0_7], %7 {strides = array<i32>} : memref<16x128xf32, #tpu.memory_space<vmem>>, vector<16x128xf32>,
    return
  }
  func.func @transform_0(%arg0: i32, %arg1: i32) -> (i32, i32) {
    %c0_i32 = arith.constant 0 : i32
    %c0_i32_0 = arith.constant 0 : i32
    return %arg0, %c0_i32 : i32, i32
  }
  func.func @transform_1(%arg0: i32, %arg1: i32) -> (i32, i32) {
    %c0_i32 = arith.constant 0 : i32
    %c0_i32_0 = arith.constant 0 : i32
    return %c0_i32, %arg1 : i32, i32
  }
  func.func @transform_2(%arg0: i32, %arg1: i32) -> (i32, i32) {
    %c0_i32 = arith.constant 0 : i32
    %c0_i32_0 = arith.constant 0 : i32
    return %c0_i32, %arg1 : i32, i32
  }
  func.func @transform_3(%arg0: i32, %arg1: i32) -> (i32, i32) {
    %c0_i32 = arith.constant 0 : i32
    return %arg0, %arg1 : i32, i32
  }
}

</mosaic_0001>

<llo_original>
// kernel: _pallas_linear_relu.1
$region0: #{_pallas_linear_relu.1}
  #allocation0 [shape = 'u32[]', space=smem, size = 0x4, offset = 0x4, fixed_abs, tag = 'smem constant byte address 0x4 - core index']
  #allocation1 [shape = 'u32[72,128]{1,0:T(1,128)}', space=vmem, size = 0x9000, scoped, tag = 'internal scratch']
  %s0 = inlined_call_operand.vmem [shape: f32[16,128], index: 0, kind: input, shape index: {}]
  %s1 = inlined_call_operand.hbm [shape: f32[128,128], index: 1, kind: input, shape index: {}]
  %s2 = inlined_call_operand.vmem [shape: f32[1,128], index: 2, kind: input, shape index: {}]
  %s3 = inlined_call_operand.hbm [shape: f32[16,128], index: 3, kind: output, shape index: {}]
  %s4 = sld [smem:[#allocation0]]
  $region26: #{_pallas_linear_relu.1} parent=0
    _
  %s6 = ssub.s32 1, %s4
  %s7 = scalar_select 0, %s6, %s4
  $region1: #{_pallas_linear_relu.1} parent=0
    #allocation2 [shape = 'u8[65536]{0}', space=vmem, size = 0x10000, scoped, tag = 'input window, operand 1, single buffered']
    #allocation3 [shape = 's32[1]{0}', space=sflag, size = 0x4, scoped, tag = 'scoped memory for _pallas_linear_relu.1']
    #allocation4 [shape = 's32[1]{0}', space=sflag, size = 0x4, scoped, tag = 'scoped memory for _pallas_linear_relu.1']
    #allocation5 [shape = 'u8[8192]{0}', space=vmem, size = 0x2000, scoped, tag = 'output window, operand 0, single buffered']
    %8 = vsyncpa [#allocation3], 0
    %9 = vsyncpa [#allocation4], 0
    // Predicated region
    $region2: #{_pallas_linear_relu.1} parent=1 // pred_check
      _
    $region3: #{_pallas_linear_relu.1} parent=1 // pred_check_branch
      %11 = sbr.rel (0) target = $region5
    $region4: #{_pallas_linear_relu.1} parent=1 // pred_region
      _
    $region5: #{_pallas_linear_relu.1} parent=1 // pred_fallthru
      _
    // Predicated region
    $region6: #{_pallas_linear_relu.1} parent=1 // pred_check
      _
    $region7: #{_pallas_linear_relu.1} parent=1 // pred_check_branch
      %13 = sbr.rel (0) target = $region9
    $region8: #{_pallas_linear_relu.1} parent=1 // pred_region
      %15 = vsyncadd [#allocation3], 0
      %s16 = sshll.u32 %s1, 4
      %s17 = int_to_ptr.hbm [resolvable:$true] %s16
      %s18 = sshll.u32 [#allocation2], 4
      %s19 = int_to_ptr.vmem [resolvable:$true] %s18
      %24 = dma.hbm_to_vmem [thread:$0]  %s17, 2048, %s19, [#allocation3], 128, 128, 8
    $region9: #{_pallas_linear_relu.1} parent=1 // pred_fallthru
      _
    // Predicated region
    $region10: #{_pallas_linear_relu.1} parent=1 // pred_check
      _
    $region11: #{_pallas_linear_relu.1} parent=1 // pred_check_branch
      %26 = sbr.rel (0) target = $region13
    $region12: #{_pallas_linear_relu.1} parent=1 // pred_region
      _
    $region13: #{_pallas_linear_relu.1} parent=1 // pred_fallthru
      _
    // Predicated region
    $region14: #{_pallas_linear_relu.1} parent=1 // pred_check
      _
    $region15: #{_pallas_linear_relu.1} parent=1 // pred_check_branch
      %28 = sbr.rel (0) target = $region17
    $region16: #{_pallas_linear_relu.1} parent=1 // pred_region
      %30 = dma.done [#allocation3], 2048
    $region17: #{_pallas_linear_relu.1} parent=1 // pred_fallthru
      _
    %v31 = vld [vmem:[%s0] sm:$0xff]
    %v32 = vld [vmem:[%s0 + $0x8] sm:$0xff]
    %v33 = vld [vmem:[#allocation2] sm:$0xff]
    %v34 = vld [vmem:[#allocation2 + $0x8] sm:$0xff]
    %v35 = vld [vmem:[#allocation2 + $0x10] sm:$0xff]
    %v36 = vld [vmem:[#allocation2 + $0x18] sm:$0xff]
    %v37 = vld [vmem:[#allocation2 + $0x20] sm:$0xff]
    %v38 = vld [vmem:[#allocation2 + $0x28] sm:$0xff]
    %v39 = vld [vmem:[#allocation2 + $0x30] sm:$0xff]
    %v40 = vld [vmem:[#allocation2 + $0x38] sm:$0xff]
    %v41 = vld [vmem:[#allocation2 + $0x40] sm:$0xff]
    %v42 = vld [vmem:[#allocation2 + $0x48] sm:$0xff]
    %v43 = vld [vmem:[#allocation2 + $0x50] sm:$0xff]
    %v44 = vld [vmem:[#allocation2 + $0x58] sm:$0xff]
    %v45 = vld [vmem:[#allocation2 + $0x60] sm:$0xff]
    %v46 = vld [vmem:[#allocation2 + $0x68] sm:$0xff]
    %v47 = vld [vmem:[#allocation2 + $0x70] sm:$0xff]
    %v48 = vld [vmem:[#allocation2 + $0x78] sm:$0xff]
    %v49 = vld [vmem:[%s2] sm:$0x1]
    %v51 = vperm.slane %v49, 0
    %53 = vmatpush.msra.mxu0 %v48
    %54 = vmatpush.msra.mxu0 %v47
    %55 = vmatpush.msra.mxu0 %v46
    %56 = vmatpush.msra.mxu0 %v45
    %57 = vmatpush.msra.mxu0 %v44
    %58 = vmatpush.msra.mxu0 %v43
    %59 = vmatpush.msra.mxu0 %v42
    %60 = vmatpush.msra.mxu0 %v41
    %61 = vmatpush.msra.mxu0 %v40
    %62 = vmatpush.msra.mxu0 %v39
    %63 = vmatpush.msra.mxu0 %v38
    %64 = vmatpush.msra.mxu0 %v37
    %65 = vmatpush.msra.mxu0 %v36
    %66 = vmatpush.msra.mxu0 %v35
    %67 = vmatpush.msra.mxu0 %v34
    %68 = vmatpush.msra.mxu0 %v33
    %69 = vmatmul.f32.gmra.mxu0 %v31
    %v70 = vpop.f32.mrf.mxu0
    %v71 = vadd.f32 %v51, %v70
    %72 = vmatmul.f32.gmra.mxu0 %v32
    %v73 = vpop.f32.mrf.mxu0
    %v74 = vadd.f32 %v51, %v73
    %75 = vdwg.mxu0
    %v76 = vmax.f32 %v71, 0.0
    %v77 = vmax.f32 %v74, 0.0
    %78 = vst [vmem:[#allocation5] sm:$0xff] %v76
    %79 = vst [vmem:[#allocation5 + $0x8] sm:$0xff] %v77
    // Predicated region
    $region18: #{_pallas_linear_relu.1} parent=1 // pred_check
      _
    $region19: #{_pallas_linear_relu.1} parent=1 // pred_check_branch
      %81 = sbr.rel (0) target = $region21
    $region20: #{_pallas_linear_relu.1} parent=1 // pred_region
      %83 = vsyncadd [#allocation4], 0
      %s84 = sshll.u32 [#allocation5], 4
      %s85 = int_to_ptr.vmem [resolvable:$true] %s84
      %s86 = sshll.u32 %s3, 4
      %s87 = int_to_ptr.hbm [resolvable:$true] %s86
      %92 = dma.vmem_to_hbm [thread:$0]  %s85, 256, %s87, [#allocation4], 128, 128, 8
    $region21: #{_pallas_linear_relu.1} parent=1 // pred_fallthru
      _
    // Predicated region
    $region22: #{_pallas_linear_relu.1} parent=1 // pred_check
      _
    $region23: #{_pallas_linear_relu.1} parent=1 // pred_check_branch
      %94 = sbr.rel (0) target = $region25
    $region24: #{_pallas_linear_relu.1} parent=1 // pred_region
      %96 = dma.done [#allocation4], 256
    $region25: #{_pallas_linear_relu.1} parent=1 // pred_fallthru
      _
    %97 = vsyncpa [#allocation3], 1
    %98 = vsyncpa [#allocation4], 1

</llo_original>
